<compile_context>
chip_gen: v5e
topology: v5e:2x2
jax: 0.10.0
libtpu: 0.0.40
codegen_flags: <defaults>
</compile_context>

<pallas_src>
import functools

import jax
import jax.numpy as jnp
from jax import lax
from jax.experimental import pallas as pl
from jax.experimental.pallas import tpu as pltpu


def _self_attn_kernel(x_ref, w_ref, b_ref, g_ref, out_ref, attn_ref,
                      q_scr, k_scr, v_scr, *, c8, mxu_dtype):
    """One (batch, query-tile) grid step.

    x_ref   : (1, C, N)    input feature map, channel-major
    w_ref   : (2*C8+C, C)  fused [Wq; Wk; Wv] 1x1-conv weights
    b_ref   : (2*C8+C, 1)  fused biases
    g_ref   : (1,)         gamma scalar (SMEM)
    out_ref : (1, C, TQ)   gamma * attn_out + x  (this tile's query columns)
    attn_ref: (1, TQ, N)   attention rows for this query tile
    q/k/v_scr: VMEM scratch holding the full projections for the batch element.
    """
    qt = pl.program_id(1)
    tq = out_ref.shape[2]

    # ---- fused QKV projection, computed once per batch element ------------
    @pl.when(qt == 0)
    def _():
        x = x_ref[0].astype(jnp.float32)                                 # (C, N)
        qkv = jnp.dot(w_ref[...], x,
                      preferred_element_type=jnp.float32) + b_ref[...]  # (2*C8+C, N)
        q_scr[...] = qkv[:c8, :]
        k_scr[...] = qkv[c8:2 * c8, :]
        v_scr[...] = qkv[2 * c8:, :]

    q_start = pl.multiple_of(qt * tq, tq)
    q = q_scr[:, pl.ds(q_start, tq)]                                     # (C8, TQ)
    k = k_scr[...]                                                       # (C8, N)
    v = v_scr[...]                                                       # (C, N)

    # energy[n, m] = sum_c q[c, n] * k[c, m]  (contract channel axis directly,
    # no explicit k.T materialization)
    energy = lax.dot_general(
        q.astype(mxu_dtype), k.astype(mxu_dtype),
        dimension_numbers=(((0,), (0,)), ((), ())),
        preferred_element_type=jnp.float32)                              # (TQ, N)

    # softmax over keys (last dim); f32 math, EUP approx reciprocal
    m = jnp.max(energy, axis=-1, keepdims=True)
    e = jnp.exp(energy - m)
    attn = e * pl.reciprocal(jnp.sum(e, axis=-1, keepdims=True), approx=True)
    attn_ref[0] = attn.astype(attn_ref.dtype)

    # out[c, n] = sum_m v[c, m] * attn[n, m]
    out = lax.dot_general(
        v.astype(mxu_dtype), attn.astype(mxu_dtype),
        dimension_numbers=(((1,), (1,)), ((), ())),
        preferred_element_type=jnp.float32)                              # (C, TQ)

    x_q = x_ref[0, :, pl.ds(q_start, tq)].astype(jnp.float32)
    out_ref[0] = (g_ref[0] * out + x_q).astype(out_ref.dtype)


def self_attn_forward(x_nchw, wq, bq, wk, bk, wv, bv, gamma, *,
                      tq=None, mxu_dtype=jnp.float32, attn_dtype=jnp.float32):
    """Self_Attn forward.  x_nchw: (B, C, W, H); conv weights (Cout, Cin, 1, 1)."""
    B, C, W, H = x_nchw.shape
    N = W * H
    C8 = wq.shape[0]

    # query-tile size: largest of {512, 256, 128} dividing N, else whole N
    if tq is None:
        tq = N
        for cand in (512, 256, 128):
            if N % cand == 0:
                tq = cand
                break
    assert N % tq == 0 and (tq == N or tq % 128 == 0), (N, tq)
    n_qt = N // tq

    # glue: NCHW -> (B, C, N) is a pure reshape (no transpose, no HBM round-trip)
    x_flat = x_nchw.reshape(B, C, N)
    w_qkv = jnp.concatenate(
        [wq.reshape(C8, C), wk.reshape(C8, C), wv.reshape(C, C)],
        axis=0).astype(jnp.float32)                                      # (2*C8+C, C)
    b_qkv = jnp.concatenate([bq, bk, bv]).reshape(2 * C8 + C, 1).astype(jnp.float32)
    g = gamma.reshape(1).astype(jnp.float32)

    # rough per-step VMEM footprint; raise the scoped limit only when it is
    # actually needed (large N on v5e/v6e); tiling already bounds it for v7x.
    est = 4 * (2 * C * N + 2 * C * tq + 2 * tq * N       # pipelined blocks
               + (2 * C8 + C) * (N + C + 1)              # scratch + weights
               + 4 * tq * N)                             # energy/exp temporaries
    vmem_limit = int(min(2 * est, 100 * 1024 * 1024)) if est > (24 << 20) else None

    kernel = functools.partial(_self_attn_kernel, c8=C8, mxu_dtype=mxu_dtype)

    out_flat, attn = pl.pallas_call(
        kernel,
        out_shape=(
            jax.ShapeDtypeStruct((B, C, N), x_nchw.dtype),
            jax.ShapeDtypeStruct((B, N, N), attn_dtype),
        ),
        grid_spec=pltpu.PrefetchScalarGridSpec(
            num_scalar_prefetch=0,
            grid=(B, n_qt),
            in_specs=[
                pl.BlockSpec((1, C, N), lambda b, qt: (b, 0, 0)),         # x
                pl.BlockSpec((2 * C8 + C, C), lambda b, qt: (0, 0)),      # W_qkv
                pl.BlockSpec((2 * C8 + C, 1), lambda b, qt: (0, 0)),      # b_qkv
                pl.BlockSpec(memory_space=pltpu.MemorySpace.SMEM),        # gamma
            ],
            out_specs=[
                pl.BlockSpec((1, C, tq), lambda b, qt: (b, 0, qt)),       # out
                pl.BlockSpec((1, tq, N), lambda b, qt: (b, qt, 0)),       # attention
            ],
            scratch_shapes=[
                pltpu.VMEM((C8, N), jnp.float32),   # Q (full, per batch elem)
                pltpu.VMEM((C8, N), jnp.float32),   # K
                pltpu.VMEM((C, N), jnp.float32),    # V
            ],
        ),
        compiler_params=pltpu.CompilerParams(
            dimension_semantics=("parallel", "arbitrary"),
            vmem_limit_bytes=vmem_limit),
    )(x_flat, w_qkv, b_qkv, g)

    out = out_flat.reshape(B, C, W, H)   # pure reshape back to NCHW
    return out, attn


def _reference(x_nchw, wq, bq, wk, bk, wv, bv, gamma):
    B, C, W, H = x_nchw.shape
    N = W * H
    C8 = wq.shape[0]
    xf = x_nchw.reshape(B, C, N)                                # (B, C, N)
    q = jnp.einsum('oc,bcn->bon', wq.reshape(C8, C), xf) + bq[None, :, None]
    k = jnp.einsum('oc,bcn->bon', wk.reshape(C8, C), xf) + bk[None, :, None]
    v = jnp.einsum('oc,bcn->bon', wv.reshape(C, C), xf) + bv[None, :, None]
    energy = jnp.einsum('bcn,bcm->bnm', q, k)                   # (B, N, N)
    attn = jax.nn.softmax(energy, axis=-1)
    out = jnp.einsum('bcm,bnm->bcn', v, attn).reshape(B, C, W, H)
    out = gamma.reshape(()) * out + x_nchw
    return out, attn


if __name__ == "__main__":
    key = jax.random.PRNGKey(0)
    B, C, W, H = 2, 32, 16, 16          # in_dim=32 -> C//8=4, N=256 (2 q-tiles of 128)
    C8 = C // 8
    N = W * H

    kx, kq, kbq, kk, kbk, kv, kbv = jax.random.split(key, 7)
    x = jax.random.normal(kx, (B, C, W, H), dtype=jnp.float32)
    wq = 0.1 * jax.random.normal(kq, (C8, C, 1, 1), dtype=jnp.float32)
    bq = 0.1 * jax.random.normal(kbq, (C8,), dtype=jnp.float32)
    wk = 0.1 * jax.random.normal(kk, (C8, C, 1, 1), dtype=jnp.float32)
    bk = 0.1 * jax.random.normal(kbk, (C8,), dtype=jnp.float32)
    wv = 0.1 * jax.random.normal(kv, (C, C, 1, 1), dtype=jnp.float32)
    bv = 0.1 * jax.random.normal(kbv, (C,), dtype=jnp.float32)
    # PyTorch inits gamma = 0 (out == x); use a nonzero deterministic value so
    # the attention path actually contributes to the checked output.
    gamma = jnp.array([0.5], dtype=jnp.float32)

    out_ref, attn_ref = _reference(x, wq, bq, wk, bk, wv, bv, gamma)

    # f32 MXU path; tolerance covers the EUP approximate reciprocal.
    out, attn = self_attn_forward(x, wq, bq, wk, bk, wv, bv, gamma, tq=128)
    jax.block_until_ready((out, attn))
    assert out.shape == (B, C, W, H) and attn.shape == (B, N, N)
    assert jnp.allclose(out, out_ref, atol=1e-2, rtol=1e-2), \
        float(jnp.max(jnp.abs(out - out_ref)))
    assert jnp.allclose(attn, attn_ref, atol=1e-3, rtol=1e-2), \
        float(jnp.max(jnp.abs(attn - attn_ref)))

    # bf16 MXU-input path (v6e/v7x fast path; f32 accumulation).
    out_bf, attn_bf = self_attn_forward(x, wq, bq, wk, bk, wv, bv, gamma,
                                        tq=128, mxu_dtype=jnp.bfloat16)
    jax.block_until_ready((out_bf, attn_bf))
    assert jnp.allclose(out_bf, out_ref, atol=5e-2, rtol=5e-2)
    assert jnp.allclose(attn_bf, attn_ref, atol=5e-3, rtol=5e-2)

    print("KERNEL_OK")
</pallas_src>

<mosaic_0001>
module attributes {stable_mosaic.version = 11 : i64} {
  func.func @_self_attn_kernel(%arg0: i32, %arg1: i32, %arg2: memref<1x32x256xf32, #tpu.memory_space<vmem>>, %arg3: memref<40x32xf32, #tpu.memory_space<vmem>>, %arg4: memref<40x1xf32, #tpu.memory_space<vmem>>, %arg5: memref<1xf32, #tpu.memory_space<smem>>, %arg6: memref<1x32x128xf32, #tpu.memory_space<vmem>>, %arg7: memref<1x128x256xf32, #tpu.memory_space<vmem>>, %arg8: memref<4x256xf32, #tpu.memory_space<vmem>>, %arg9: memref<4x256xf32, #tpu.memory_space<vmem>>, %arg10: memref<32x256xf32, #tpu.memory_space<vmem>>) attributes {dimension_semantics = [#tpu.dimension_semantics<parallel>, #tpu.dimension_semantics<arbitrary>], iteration_bounds = array<i64: 2, 2>, scalar_prefetch = 0 : i64, scratch_operands = 3 : i64, tpu.core_type = #tpu.core_type<tc>, window_params = [{transform_indices = @transform_0, window_bounds = array<i64: 1, 32, 256>}, {pipeline_mode = #tpu.pipeline_mode<synchronous>, transform_indices = @transform_1, window_bounds = array<i64: 40, 32>}, {pipeline_mode = #tpu.pipeline_mode<synchronous>, transform_indices = @transform_2, window_bounds = array<i64: 40, 1>}, {transform_indices = @transform_3, window_bounds = array<i64: 1>}, {transform_indices = @transform_4, window_bounds = array<i64: 1, 32, 128>}, {transform_indices = @transform_5, window_bounds = array<i64: 1, 128, 256>}]} {
    %c0_i32 = arith.constant 0 : i32
    %0 = arith.cmpi eq, %arg1, %c0_i32 : i32
    %1 = arith.extui %0 : i1 to i32
    %c0_i32_0 = arith.constant 0 : i32
    %2 = arith.cmpi ne, %1, %c0_i32_0 : i32
    scf.if %2 {
      %c0_17 = arith.constant 0 : index
      %c0_18 = arith.constant 0 : index
      %c0_19 = arith.constant 0 : index
      %34 = vector.load %arg2[%c0_17, %c0_18, %c0_19] : memref<1x32x256xf32, #tpu.memory_space<vmem>>, vector<1x32x256xf32>
      %35 = vector.shape_cast %34 : vector<1x32x256xf32> to vector<32x256xf32>
      %c0_20 = arith.constant 0 : index
      %c0_21 = arith.constant 0 : index
      %36 = vector.load %arg3[%c0_20, %c0_21] : memref<40x32xf32, #tpu.memory_space<vmem>>, vector<40x32xf32>
      %cst_22 = arith.constant dense<0.000000e+00> : vector<40x256xf32>
      %37 = tpu.matmul %36, %35, %cst_22 {dimension_numbers = #tpu.dot_dimension_numbers<[1], [0], [0], [1], [0, 0, 1, 1], [], []>} : vector<40x32xf32>, vector<32x256xf32>, vector<40x256xf32> -> vector<40x256xf32>
      %c0_23 = arith.constant 0 : index
      %c0_24 = arith.constant 0 : index
      %38 = vector.load %arg4[%c0_23, %c0_24] : memref<40x1xf32, #tpu.memory_space<vmem>>, vector<40x1xf32>
      %39 = vector.broadcast %38 : vector<40x1xf32> to vector<40x256xf32>
      %40 = arith.addf %37, %39 : vector<40x256xf32>
      %41 = vector.extract_strided_slice %40 {offsets = [0, 0], sizes = [4, 256], strides = [1, 1]} : vector<40x256xf32> to vector<4x256xf32>
      %c0_25 = arith.constant 0 : index
      %c0_26 = arith.constant 0 : index
      %42 = vector.load %arg8[%c0_25, %c0_26] : memref<4x256xf32, #tpu.memory_space<vmem>>, vector<4x256xf32>
      tpu.vector_store %arg8[%c0_25, %c0_26], %41 {strides = array<i32>} : memref<4x256xf32, #tpu.memory_space<vmem>>, vector<4x256xf32>,
      %43 = vector.extract_strided_slice %40 {offsets = [4, 0], sizes = [4, 256], strides = [1, 1]} : vector<40x256xf32> to vector<4x256xf32>
      %c0_27 = arith.constant 0 : index
      %c0_28 = arith.constant 0 : index
      %44 = vector.load %arg9[%c0_27, %c0_28] : memref<4x256xf32, #tpu.memory_space<vmem>>, vector<4x256xf32>
      tpu.vector_store %arg9[%c0_27, %c0_28], %43 {strides = array<i32>} : memref<4x256xf32, #tpu.memory_space<vmem>>, vector<4x256xf32>,
      %45 = vector.extract_strided_slice %40 {offsets = [8, 0], sizes = [32, 256], strides = [1, 1]} : vector<40x256xf32> to vector<32x256xf32>
      %c0_29 = arith.constant 0 : index
      %c0_30 = arith.constant 0 : index
      %46 = vector.load %arg10[%c0_29, %c0_30] : memref<32x256xf32, #tpu.memory_space<vmem>>, vector<32x256xf32>
      tpu.vector_store %arg10[%c0_29, %c0_30], %45 {strides = array<i32>} : memref<32x256xf32, #tpu.memory_space<vmem>>, vector<32x256xf32>,
    } else {
    }
    %c128_i32 = arith.constant 128 : i32
    %3 = arith.muli %arg1, %c128_i32 : i32
    %4 = tpu.assume_multiple %3, 128 : i32
    %c0 = arith.constant 0 : index
    %5 = arith.index_cast %4 : i32 to index
    %6 = vector.load %arg8[%c0, %5] : memref<4x256xf32, #tpu.memory_space<vmem>>, vector<4x128xf32>
    %c0_1 = arith.constant 0 : index
    %c0_2 = arith.constant 0 : index
    %7 = vector.load %arg9[%c0_1, %c0_2] : memref<4x256xf32, #tpu.memory_space<vmem>>, vector<4x256xf32>
    %c0_3 = arith.constant 0 : index
    %c0_4 = arith.constant 0 : index
    %8 = vector.load %arg10[%c0_3, %c0_4] : memref<32x256xf32, #tpu.memory_space<vmem>>, vector<32x256xf32>
    %cst = arith.constant dense<0.000000e+00> : vector<128x256xf32>
    %9 = tpu.matmul %6, %7, %cst {dimension_numbers = #tpu.dot_dimension_numbers<[0], [0], [1], [1], [0, 1, 1, 1], [], []>} : vector<4x128xf32>, vector<4x256xf32>, vector<128x256xf32> -> vector<128x256xf32>
    %cst_5 = arith.constant dense<0xFF800000> : vector<128xf32>
    %10 = vector.multi_reduction <maximumf>, %9, %cst_5 [1] : vector<128x256xf32> to vector<128xf32>
    %11 = vector.shape_cast %10 : vector<128xf32> to vector<128x1xf32>
    %12 = vector.broadcast %11 : vector<128x1xf32> to vector<128x256xf32>
    %13 = arith.subf %9, %12 : vector<128x256xf32>
    %14 = math.exp %13 : vector<128x256xf32>
    %cst_6 = arith.constant dense<0.000000e+00> : vector<128xf32>
    %15 = vector.multi_reduction <add>, %14, %cst_6 [1] : vector<128x256xf32> to vector<128xf32>
    %16 = vector.shape_cast %15 : vector<128xf32> to vector<128x1xf32>
    %17 = tpu.reciprocal %16 {approx = true} : vector<128x1xf32> -> vector<128x1xf32>
    %18 = vector.broadcast %17 : vector<128x1xf32> to vector<128x256xf32>
    %19 = arith.mulf %14, %18 : vector<128x256xf32>
    %c0_7 = arith.constant 0 : index
    %c0_8 = arith.constant 0 : index
    %c0_9 = arith.constant 0 : index
    %20 = vector.load %arg7[%c0_7, %c0_8, %c0_9] : memref<1x128x256xf32, #tpu.memory_space<vmem>>, vector<1x128x256xf32>
    %21 = vector.shape_cast %20 : vector<1x128x256xf32> to vector<128x256xf32>
    %22 = vector.shape_cast %19 : vector<128x256xf32> to vector<1x128x256xf32>
    tpu.vector_store %arg7[%c0_7, %c0_8, %c0_9], %22 {strides = array<i32>} : memref<1x128x256xf32, #tpu.memory_space<vmem>>, vector<1x128x256xf32>,
    %cst_10 = arith.constant dense<0.000000e+00> : vector<32x128xf32>
    %23 = tpu.matmul %8, %19, %cst_10 {dimension_numbers = #tpu.dot_dimension_numbers<[1], [1], [0], [0], [0, 0, 1, 0], [], []>} : vector<32x256xf32>, vector<128x256xf32>, vector<32x128xf32> -> vector<32x128xf32>
    %c0_11 = arith.constant 0 : index
    %c0_12 = arith.constant 0 : index
    %24 = arith.index_cast %4 : i32 to index
    %25 = vector.load %arg2[%c0_11, %c0_12, %24] : memref<1x32x256xf32, #tpu.memory_space<vmem>>, vector<1x32x128xf32>
    %26 = vector.shape_cast %25 : vector<1x32x128xf32> to vector<32x128xf32>
    %c0_13 = arith.constant 0 : index
    %27 = memref.load %arg5[%c0_13] : memref<1xf32, #tpu.memory_space<smem>>
    %28 = vector.broadcast %27 : f32 to vector<32x128xf32>
    %29 = arith.mulf %28, %23 : vector<32x128xf32>
    %30 = arith.addf %29, %26 : vector<32x128xf32>
    %c0_14 = arith.constant 0 : index
    %c0_15 = arith.constant 0 : index
    %c0_16 = arith.constant 0 : index
    %31 = vector.load %arg6[%c0_14, %c0_15, %c0_16] : memref<1x32x128xf32, #tpu.memory_space<vmem>>, vector<1x32x128xf32>
    %32 = vector.shape_cast %31 : vector<1x32x128xf32> to vector<32x128xf32>
    %33 = vector.shape_cast %30 : vector<32x128xf32> to vector<1x32x128xf32>
    tpu.vector_store %arg6[%c0_14, %c0_15, %c0_16], %33 {strides = array<i32>} : memref<1x32x128xf32, #tpu.memory_space<vmem>>, vector<1x32x128xf32>,
    return
  }
  func.func @transform_0(%arg0: i32, %arg1: i32) -> (i32, i32, i32) {
    %c0_i32 = arith.constant 0 : i32
    %c0_i32_0 = arith.constant 0 : i32
    %c0_i32_1 = arith.constant 0 : i32
    return %arg0, %c0_i32, %c0_i32_0 : i32, i32, i32
  }
  func.func @transform_1(%arg0: i32, %arg1: i32) -> (i32, i32) {
    %c0_i32 = arith.constant 0 : i32
    %c0_i32_0 = arith.constant 0 : i32
    %c0_i32_1 = arith.constant 0 : i32
    return %c0_i32, %c0_i32_0 : i32, i32
  }
  func.func @transform_2(%arg0: i32, %arg1: i32) -> (i32, i32) {
    %c0_i32 = arith.constant 0 : i32
    %c0_i32_0 = arith.constant 0 : i32
    %c0_i32_1 = arith.constant 0 : i32
    return %c0_i32, %c0_i32_0 : i32, i32
  }
  func.func @transform_3(%arg0: i32, %arg1: i32) -> i32 {
    %c0_i32 = arith.constant 0 : i32
    %c0_i32_0 = arith.constant 0 : i32
    return %c0_i32 : i32
  }
  func.func @transform_4(%arg0: i32, %arg1: i32) -> (i32, i32, i32) {
    %c0_i32 = arith.constant 0 : i32
    %c0_i32_0 = arith.constant 0 : i32
    return %arg0, %c0_i32, %arg1 : i32, i32, i32
  }
  func.func @transform_5(%arg0: i32, %arg1: i32) -> (i32, i32, i32) {
    %c0_i32 = arith.constant 0 : i32
    %c0_i32_0 = arith.constant 0 : i32
    return %arg0, %arg1, %c0_i32 : i32, i32, i32
  }
}

</mosaic_0001>

<llo_original>
// kernel: tpu_custom_call.1
$region0: #{tpu_custom_call.1}
  #allocation0 [shape = 'u32[]', space=smem, size = 0x4, offset = 0x4, fixed_abs, tag = 'smem constant byte address 0x4 - core index']
  #allocation1 [shape = 'u32[72,128]{1,0:T(1,128)}', space=vmem, size = 0x9000, scoped, tag = 'internal scratch']
  #allocation2 [shape = 'f32[4,256]{1,0:T(4,128)}', space=vmem, size = 0x1000, scoped, tag = 'scratch operand']
  #allocation3 [shape = 'f32[4,256]{1,0:T(4,128)}', space=vmem, size = 0x1000, scoped, tag = 'scratch operand']
  #allocation4 [shape = 'f32[32,256]{1,0:T(8,128)}', space=vmem, size = 0x8000, scoped, tag = 'scratch operand']
  #allocation5 [shape = 'f32[1]{0:T(128)S(6)}', space=smem, size = 0x200, scoped, tag = 'scoped memory for tpu_custom_call.1']
  %s0 = inlined_call_operand.hbm [shape: f32[2,32,256], index: 0, kind: input, shape index: {}]
  %s1 = inlined_call_operand.vmem [shape: f32[40,32], index: 1, kind: input, shape index: {}]
  %s2 = inlined_call_operand.vmem [shape: f32[40,1], index: 2, kind: input, shape index: {}]
  %s3 = inlined_call_operand.<no memory space> [shape: f32[1], index: 3, kind: input, shape index: {}]
  %s4 = inlined_call_operand.hbm [shape: f32[2,32,256], index: 4, kind: output, shape index: {0}]
  %s5 = inlined_call_operand.hbm [shape: f32[2,256,256], index: 5, kind: output, shape index: {1}]
  %6 = xla_tuple %s4, %s5
  %s7 = sld [smem:[#allocation0]]
  $region65: #{tpu_custom_call.1} parent=0
    _
  %s9 = ssub.s32 1, %s7
  %s10 = scalar_select 0, %s9, %s7
  %11 = sst [smem:[#allocation5]] %s3
  $region1: #{tpu_custom_call.1} parent=0
    #allocation6 [shape = 'u8[65536]{0}', space=vmem, size = 0x10000, scoped, tag = 'input window, operand 0']
    #allocation7 [shape = 's32[2]{0}', space=sflag, size = 0x8, scoped, tag = 'scoped memory for tpu_custom_call.1']
    #allocation8 [shape = 's32[2]{0}', space=sflag, size = 0x8, scoped, tag = 'scoped memory for tpu_custom_call.1']
    #allocation9 [shape = 'u8[32768]{0}', space=vmem, size = 0x8000, scoped, tag = 'output window, operand 0']
    #allocation10 [shape = 'u8[262144]{0}', space=vmem, size = 0x40000, scoped, tag = 'output window, operand 1']
    #allocation11 [shape = 's32[2]{0}', space=sflag, size = 0x8, scoped, tag = 'scoped memory for tpu_custom_call.1']
    %12 = vsyncpa [#allocation7], 0
    %s13 = scalar_lea.sflag [#allocation7], 1
    %14 = vsyncpa %s13, 0
    %15 = vsyncpa [#allocation8], 0
    %s16 = scalar_lea.sflag [#allocation8], 1
    %17 = vsyncpa %s16, 0
    %18 = vsyncpa [#allocation11], 0
    %s19 = scalar_lea.sflag [#allocation11], 1
    %20 = vsyncpa %s19, 0
    loop: start=0, step=1, limit=6
    $region2: #{tpu_custom_call.1} parent=1 // loop_pre_header
      _
    $region3: #{tpu_custom_call.1} parent=1 // loop_header
      %s22 = sphi 0, %s26
      %p23 = scmp.ge.s32.totalorder %s22, 6
      %s29 = sphi 0, %s41
      %s30 = sphi 0, %s37
      %s31 = sphi 0, %s29
      %s32 = sphi 0, %s30
      %s33 = sphi 0, %s31
      %s34 = sphi 0, %s32
      %s44 = sphi 0, %s46
      %s47 = sphi 0, %s44
      %s48 = sphi 0, %s47
      %s64 = sphi 0, %s48
      %s68 = sphi 0, %s68
      %s70 = sphi 0, %s68
      %s71 = sphi 0, %s70
      %s85 = sphi 0, %s71
      %s89 = sphi 0, %s89
      %s91 = sphi 0, %s89
      %s92 = sphi 0, %s91
      %s106 = sphi 0, %s92
      %s110 = sphi 0, %s110
      %s112 = sphi 0, %s110
      %s113 = sphi 0, %s112
      %s127 = sphi 0, %s113
      %s135 = sphi 0, %s137
      %s138 = sphi 0, %s135
      %s139 = sphi 0, %s138
      %s155 = sphi 0, %s139
      %s163 = sphi 0, %s165
      %s166 = sphi 0, %s163
      %s167 = sphi 0, %s166
      %s183 = sphi 0, %s167
    $region4: #{tpu_custom_call.1} parent=1 // loop_header_branch
      %25 = sbr.rel (%p23) target = $region8
    $region5: #{tpu_custom_call.1} parent=1 // loop_body
      %s27 = ssub.s32 %s22, 1
      %s28 = ssub.s32 %s22, 2
      %s35 = sadd.s32 1, %s30
      %p36 = scmp.ge.s32.totalorder %s35, 2
      %s37 = scalar_select %p36, 0, %s35
      %s38 = sadd.s32 1, %s29
      %s39 = scalar_select %p36, %s38, %s29
      %p40 = scmp.ge.s32.totalorder %s39, 2
      %s41 = scalar_select %p40, 0, %s39
      %s42 = ssub.s32 %s29, %s41
      %p43 = scmp.eq.s32.totalorder %s42, 0
      %s45 = sadd.s32 %s44, 1
      %s46 = scalar_select %p43, %s44, %s45
      %p49 = pneg %p43
      %p50 = scmp.eq.s32.totalorder %s22, 3
      %p51 = por %p49, %p50
      %p52 = scmp.ne.s32.totalorder %s44, %s47
      %p53 = scmp.eq.s32.totalorder %s22, 0
      %p54 = por %p52, %p53
      %p55 = scmp.ne.s32.totalorder %s44, %s47
      %p56 = scmp.eq.s32.totalorder %s27, 3
      %p57 = por %p55, %p56
      %p58 = scmp.ne.s32.totalorder %s47, %s48
      %p59 = scmp.eq.s32.totalorder %s27, 0
      %p60 = por %p58, %p59
      %p61 = scmp.ne.s32.totalorder %s47, %s48
      %p62 = scmp.eq.s32.totalorder %s28, 3
      %p63 = por %p61, %p62
      %p65 = scmp.ne.s32.totalorder %s48, %s64
      %p66 = scmp.eq.s32.totalorder %s28, 0
      %p67 = por %p65, %p66
      %s69 = sadd.s32 %s68, 1
      %p72 = scmp.eq.s32.totalorder %s22, 3
      %p73 = scmp.ne.s32.totalorder %s68, %s70
      %p74 = scmp.eq.s32.totalorder %s22, 0
      %p75 = por %p73, %p74
      %p76 = scmp.ne.s32.totalorder %s68, %s70
      %p77 = scmp.eq.s32.totalorder %s27, 3
      %p78 = por %p76, %p77
      %p79 = scmp.ne.s32.totalorder %s70, %s71
      %p80 = scmp.eq.s32.totalorder %s27, 0
      %p81 = por %p79, %p80
      %p82 = scmp.ne.s32.totalorder %s70, %s71
      %p83 = scmp.eq.s32.totalorder %s28, 3
      %p84 = por %p82, %p83
      %p86 = scmp.ne.s32.totalorder %s71, %s85
      %p87 = scmp.eq.s32.totalorder %s28, 0
      %p88 = por %p86, %p87
      %s90 = sadd.s32 %s89, 1
      %p93 = scmp.eq.s32.totalorder %s22, 3
      %p94 = scmp.ne.s32.totalorder %s89, %s91
      %p95 = scmp.eq.s32.totalorder %s22, 0
      %p96 = por %p94, %p95
      %p97 = scmp.ne.s32.totalorder %s89, %s91
      %p98 = scmp.eq.s32.totalorder %s27, 3
      %p99 = por %p97, %p98
      %p100 = scmp.ne.s32.totalorder %s91, %s92
      %p101 = scmp.eq.s32.totalorder %s27, 0
      %p102 = por %p100, %p101
      %p103 = scmp.ne.s32.totalorder %s91, %s92
      %p104 = scmp.eq.s32.totalorder %s28, 3
      %p105 = por %p103, %p104
      %p107 = scmp.ne.s32.totalorder %s92, %s106
      %p108 = scmp.eq.s32.totalorder %s28, 0
      %p109 = por %p107, %p108
      %s111 = sadd.s32 %s110, 1
      %p114 = scmp.eq.s32.totalorder %s22, 3
      %p115 = scmp.ne.s32.totalorder %s110, %s112
      %p116 = scmp.eq.s32.totalorder %s22, 0
      %p117 = por %p115, %p116
      %p118 = scmp.ne.s32.totalorder %s110, %s112
      %p119 = scmp.eq.s32.totalorder %s27, 3
      %p120 = por %p118, %p119
      %p121 = scmp.ne.s32.totalorder %s112, %s113
      %p122 = scmp.eq.s32.totalorder %s27, 0
      %p123 = por %p121, %p122
      %p124 = scmp.ne.s32.totalorder %s112, %s113
      %p125 = scmp.eq.s32.totalorder %s28, 3
      %p126 = por %p124, %p125
      %p128 = scmp.ne.s32.totalorder %s113, %s127
      %p129 = scmp.eq.s32.totalorder %s28, 0
      %p130 = por %p128, %p129
      %s131 = ssub.s32 %s29, %s41
      %s132 = ssub.s32 %s30, %s37
      %s133 = sor.u32 %s131, %s132
      %p134 = scmp.eq.s32.totalorder %s133, 0
      %s136 = sadd.s32 %s135, 1
      %s137 = scalar_select %p134, %s135, %s136
      %p140 = pneg %p134
      %p141 = scmp.eq.s32.totalorder %s22, 3
      %p142 = por %p140, %p141
      %p143 = scmp.ne.s32.totalorder %s135, %s138
      %p144 = scmp.eq.s32.totalorder %s22, 0
      %p145 = por %p143, %p144
      %p146 = scmp.ne.s32.totalorder %s135, %s138
      %p147 = scmp.eq.s32.totalorder %s27, 3
      %p148 = por %p146, %p147
      %p149 = scmp.ne.s32.totalorder %s138, %s139
      %p150 = scmp.eq.s32.totalorder %s27, 0
      %p151 = por %p149, %p150
      %p152 = scmp.ne.s32.totalorder %s138, %s139
      %p153 = scmp.eq.s32.totalorder %s28, 3
      %p154 = por %p152, %p153
      %p156 = scmp.ne.s32.totalorder %s139, %s155
      %p157 = scmp.eq.s32.totalorder %s28, 0
      %p158 = por %p156, %p157
      %s159 = ssub.s32 %s29, %s41
      %s160 = ssub.s32 %s30, %s37
      %s161 = sor.u32 %s159, %s160
      %p162 = scmp.eq.s32.totalorder %s161, 0
      %s164 = sadd.s32 %s163, 1
      %s165 = scalar_select %p162, %s163, %s164
      %p168 = pneg %p162
      %p169 = scmp.eq.s32.totalorder %s22, 3
      %p170 = por %p168, %p169
      %p171 = scmp.ne.s32.totalorder %s163, %s166
      %p172 = scmp.eq.s32.totalorder %s22, 0
      %p173 = por %p171, %p172
      %p174 = scmp.ne.s32.totalorder %s163, %s166
      %p175 = scmp.eq.s32.totalorder %s27, 3
      %p176 = por %p174, %p175
      %p177 = scmp.ne.s32.totalorder %s166, %s167
      %p178 = scmp.eq.s32.totalorder %s27, 0
      %p179 = por %p177, %p178
      %p180 = scmp.ne.s32.totalorder %s166, %s167
      %p181 = scmp.eq.s32.totalorder %s28, 3
      %p182 = por %p180, %p181
      %p184 = scmp.ne.s32.totalorder %s167, %s183
      %p185 = scmp.eq.s32.totalorder %s28, 0
      %p186 = por %p184, %p185
      %p187 = scmp.le.s32.totalorder 1, %s22
      %p188 = scmp.lt.s32.totalorder %s22, 5
      %p189 = pnand %p187, %p188
      %p190 = pneg %p189
      // Predicated region
      $region9: #{tpu_custom_call.1} parent=5 // pred_check
        _
      $region10: #{tpu_custom_call.1} parent=5 // pred_check_branch
        %192 = sbr.rel (%p189) target = $region12
      $region11: #{tpu_custom_call.1} parent=5 // pred_region
        %s193 = ssub.s32 %s22, 1
        // Predicated region
        $region13: #{tpu_custom_call.1} parent=11 // pred_check
          %p194 = pneg %p81
        $region14: #{tpu_custom_call.1} parent=11 // pred_check_branch
          %196 = sbr.rel (%p194) target = $region16
        $region15: #{tpu_custom_call.1} parent=11 // pred_region
          _
        $region16: #{tpu_custom_call.1} parent=11 // pred_fallthru
          _
        // Predicated region
        $region17: #{tpu_custom_call.1} parent=11 // pred_check
          %p197 = pneg %p102
        $region18: #{tpu_custom_call.1} parent=11 // pred_check_branch
          %199 = sbr.rel (%p197) target = $region20
        $region19: #{tpu_custom_call.1} parent=11 // pred_region
          _
        $region20: #{tpu_custom_call.1} parent=11 // pred_fallthru
          _
        // Predicated region
        $region21: #{tpu_custom_call.1} parent=11 // pred_check
          %p200 = pneg %p123
        $region22: #{tpu_custom_call.1} parent=11 // pred_check_branch
          %202 = sbr.rel (%p200) target = $region24
        $region23: #{tpu_custom_call.1} parent=11 // pred_region
          _
        $region24: #{tpu_custom_call.1} parent=11 // pred_fallthru
          _
      $region12: #{tpu_custom_call.1} parent=5 // pred_fallthru
        _
      %p203 = scmp.lt.s32.totalorder %s22, 4
      // Predicated region
      $region25: #{tpu_custom_call.1} parent=5 // pred_check
        %p204 = pneg %p203
      $region26: #{tpu_custom_call.1} parent=5 // pred_check_branch
        %206 = sbr.rel (%p204) target = $region28
      $region27: #{tpu_custom_call.1} parent=5 // pred_region
        // Predicated region
        $region29: #{tpu_custom_call.1} parent=27 // pred_check
          %p207 = pneg %p54
        $region30: #{tpu_custom_call.1} parent=27 // pred_check_branch
          %209 = sbr.rel (%p207) target = $region32
        $region31: #{tpu_custom_call.1} parent=27 // pred_region
          %s210 = sand.u32 %s44, 1
          %s211 = scalar_lea.sflag [#allocation7], %s210
          %s212 = sand.u32 %s44, 1
          %s213 = smul.addr %s212, 64
          %s214 = scalar_lea.vmem [#allocation6], %s213
          %216 = vsyncadd %s211, 0
          %s217 = smul.addr %s29, 8
          %s218 = smul.addr %s217, 8
          %s219 = scalar_lea.hbm %s0, %s218
          %s220 = sshll.u32 %s219, 4
          %s221 = int_to_ptr.hbm [resolvable:$true] %s220
          %s222 = sshll.u32 %s214, 4
          %s223 = int_to_ptr.vmem [resolvable:$true] %s222
          %228 = dma.hbm_to_vmem [thread:$0]  %s221, 1024, %s223, %s211, 256, 256, 16
        $region32: #{tpu_custom_call.1} parent=27 // pred_fallthru
          _
      $region28: #{tpu_custom_call.1} parent=5 // pred_fallthru
        _
      %p229 = scmp.le.s32.totalorder 1, %s22
      %p230 = scmp.lt.s32.totalorder %s22, 5
      %p231 = pnand %p229, %p230
      %p232 = pneg %p231
      // Predicated region
      $region33: #{tpu_custom_call.1} parent=5 // pred_check
        _
      $region34: #{tpu_custom_call.1} parent=5 // pred_check_branch
        %234 = sbr.rel (%p231) target = $region36
      $region35: #{tpu_custom_call.1} parent=5 // pred_region
        %s235 = ssub.s32 %s22, 1
        %s236 = sand.u32 %s47, 1
        %s237 = scalar_lea.sflag [#allocation7], %s236
        %s238 = sand.u32 %s47, 1
        %s239 = smul.addr %s238, 64
        %s240 = scalar_lea.vmem [#allocation6], %s239
        // Predicated region
        $region37: #{tpu_custom_call.1} parent=35 // pred_check
          %p241 = pneg %p60
        $region38: #{tpu_custom_call.1} parent=35 // pred_check_branch
          %243 = sbr.rel (%p241) target = $region40
        $region39: #{tpu_custom_call.1} parent=35 // pred_region
          %245 = dma.done %s237, 1024
        $region40: #{tpu_custom_call.1} parent=35 // pred_fallthru
          _
        %s246 = sand.u32 %s47, 1
        %s247 = scalar_lea.sflag [#allocation7], %s246
        %s248 = sand.u32 %s47, 1
        %s249 = smul.addr %s248, 64
        %s250 = scalar_lea.vmem [#allocation6], %s249
        %p251 = pneg %p60
        %p252 = pneg %p57
        %p253 = pneg %p81
        %p254 = pneg %p78
        %p255 = pneg %p102
        %p256 = pneg %p99
        %p257 = pneg %p123
        %p258 = pneg %p120
        %p259 = pneg %p151
        %p260 = pneg %p148
        %s261 = sand.u32 %s138, 1
        %s262 = scalar_lea.sflag [#allocation8], %s261
        %s263 = sand.u32 %s138, 1
        %s264 = smul.addr %s263, 32
        %s265 = scalar_lea.vmem [#allocation9], %s264
        %p266 = pneg %p179
        %p267 = pneg %p176
        %s268 = sand.u32 %s166, 1
        %s269 = scalar_lea.sflag [#allocation11], %s268
        %s270 = sand.u32 %s166, 1
        %s271 = smul.addr %s270, 256
        %s272 = scalar_lea.vmem [#allocation10], %s271
        %s273 = smul.u32 16, %s32
        %p274 = scmp.eq.s32.totalorder %s32, 0
        // Predicated region
        $region41: #{tpu_custom_call.1} parent=35 // pred_check
          %p275 = pneg %p274
        $region42: #{tpu_custom_call.1} parent=35 // pred_check_branch
          %277 = sbr.rel (%p275) target = $region44
        $region43: #{tpu_custom_call.1} parent=35 // pred_region
          %v278 = vld [vmem:[%s240] sm:$0xff]
          %v279 = vld [vmem:[%s240 + $0x8] sm:$0xff]
          %v280 = vld [vmem:[%s240 + $0x10] sm:$0xff]
          %v281 = vld [vmem:[%s240 + $0x18] sm:$0xff]
          %v282 = vld [vmem:[%s240 + $0x20] sm:$0xff]
          %v283 = vld [vmem:[%s240 + $0x28] sm:$0xff]
          %v284 = vld [vmem:[%s240 + $0x30] sm:$0xff]
          %v285 = vld [vmem:[%s240 + $0x38] sm:$0xff]
          %v286 = vld [vmem:[%s1] sm:$0xff]
          %v287 = vld [vmem:[%s1 + $0x8] sm:$0xff]
          %v288 = vld [vmem:[%s1 + $0x10] sm:$0xff]
          %v289 = vld [vmem:[%s1 + $0x18] sm:$0xff]
          %v290 = vld [vmem:[%s1 + $0x20] sm:$0xff]
          %v291 = vld [vmem:[%s2] sm:$0xff]
          %v292 = vld [vmem:[%s2 + $0x8] sm:$0xff]
          %v293 = vld [vmem:[%s2 + $0x10] sm:$0xff]
          %v294 = vld [vmem:[%s2 + $0x18] sm:$0xff]
          %v295 = vld [vmem:[%s2 + $0x20] sm:$0xff]
          %297 = vset.pattern.permute.xlu0 0
          %298 = vperm.xlu0 %297, %v291
          %v299 = vpop.permute.xlu0 %298
          %302 = vset.pattern.permute.xlu0 0
          %303 = vperm.xlu0 %302, %v292
          %v304 = vpop.permute.xlu0 %303
          %307 = vset.pattern.permute.xlu0 0
          %308 = vperm.xlu0 %307, %v293
          %v309 = vpop.permute.xlu0 %308
          %312 = vset.pattern.permute.xlu0 0
          %313 = vperm.xlu0 %312, %v294
          %v314 = vpop.permute.xlu0 %313
          %317 = vset.pattern.permute.xlu0 0
          %318 = vperm.xlu0 %317, %v295
          %v319 = vpop.permute.xlu0 %318
          %vm321 = vcmask 261120
          %v323 = vsel %vm321, %v286, 0
          %v326 = vsel %vm321, %v287, 0
          %v329 = vsel %vm321, %v288, 0
          %v332 = vsel %vm321, %v289, 0
          %v335 = vsel %vm321, %v290, 0
          %337 = vmatpush.msra.mxu0 0.0
          %338 = vmatpush.msra.mxu0 0.0
          %339 = vmatpush.msra.mxu0 0.0
          %340 = vmatpush.msra.mxu0 0.0
          %341 = vmatpush.msra.mxu0 0.0
          %342 = vmatpush.msra.mxu0 0.0
          %343 = vmatpush.msra.mxu0 0.0
          %344 = vmatpush.msra.mxu0 0.0
          %345 = vmatpush.msra.mxu0 0.0
          %346 = vmatpush.msra.mxu0 0.0
          %347 = vmatpush.msra.mxu0 0.0
          %348 = vmatpush.msra.mxu0 0.0
          %349 = vmatpush.msra.mxu0 %v284
          %350 = vmatpush.msra.mxu0 %v282
          %351 = vmatpush.msra.mxu0 %v280
          %352 = vmatpush.msra.mxu0 %v278
          %353 = vmatmul.f32.gmra.mxu0 %v323
          %v354 = vpop.f32.mrf.mxu0
          %v355 = vadd.f32 %v299, %v354
          %356 = vmatmul.f32.gmra.mxu0 %v326
          %v357 = vpop.f32.mrf.mxu0
          %v358 = vadd.f32 %v304, %v357
          %359 = vmatmul.f32.gmra.mxu0 %v329
          %v360 = vpop.f32.mrf.mxu0
          %v361 = vadd.f32 %v309, %v360
          %362 = vmatmul.f32.gmra.mxu0 %v332
          %v363 = vpop.f32.mrf.mxu0
          %v364 = vadd.f32 %v314, %v363
          %365 = vmatmul.f32.gmra.mxu0 %v335
          %v366 = vpop.f32.mrf.mxu0
          %v367 = vadd.f32 %v319, %v366
          %368 = vdwg.mxu0
          %369 = vmatpush.msra.mxu0 0.0
          %370 = vmatpush.msra.mxu0 0.0
          %371 = vmatpush.msra.mxu0 0.0
          %372 = vmatpush.msra.mxu0 0.0
          %373 = vmatpush.msra.mxu0 0.0
          %374 = vmatpush.msra.mxu0 0.0
          %375 = vmatpush.msra.mxu0 0.0
          %376 = vmatpush.msra.mxu0 0.0
          %377 = vmatpush.msra.mxu0 0.0
          %378 = vmatpush.msra.mxu0 0.0
          %379 = vmatpush.msra.mxu0 0.0
          %380 = vmatpush.msra.mxu0 0.0
          %381 = vmatpush.msra.mxu0 %v285
          %382 = vmatpush.msra.mxu0 %v283
          %383 = vmatpush.msra.mxu0 %v281
          %384 = vmatpush.msra.mxu0 %v279
          %385 = vmatmul.f32.gmra.mxu0 %v323
          %v386 = vpop.f32.mrf.mxu0
          %v387 = vadd.f32 %v299, %v386
          %388 = vmatmul.f32.gmra.mxu0 %v326
          %v389 = vpop.f32.mrf.mxu0
          %v390 = vadd.f32 %v304, %v389
          %391 = vmatmul.f32.gmra.mxu0 %v329
          %v392 = vpop.f32.mrf.mxu0
          %v393 = vadd.f32 %v309, %v392
          %394 = vmatmul.f32.gmra.mxu0 %v332
          %v395 = vpop.f32.mrf.mxu0
          %v396 = vadd.f32 %v314, %v395
          %397 = vmatmul.f32.gmra.mxu0 %v335
          %v398 = vpop.f32.mrf.mxu0
          %v399 = vadd.f32 %v319, %v398
          %400 = vdwg.mxu0
          %v403 = vrot.slane %v387, 4
          %vm404 = vcmask 1043456
          %v405 = vsel %vm404, %v355, %v403
          %407 = vst [vmem:[#allocation2] sm:$0xff] %v405
          %408 = vst.sshfl [vmem:[#allocation1] sm:$0xff pattern:$0x75316420] %v355
          %409 = vst.sshfl [vmem:[#allocation1 + $0x8] sm:$0xff pattern:$0x75316420] %v387
          %s410 = scalar_lea.vmem [#allocation1], 1
          %v411 = vld [vmem:[%s410] ss:$2 sm:$0xff]
          %413 = vst [vmem:[#allocation3] sm:$0xff] %v411
          %414 = vst [vmem:[#allocation4] sm:$0xff] %v358
          %415 = vst [vmem:[#allocation4 + $0x8] sm:$0xff] %v390
          %416 = vst [vmem:[#allocation4 + $0x10] sm:$0xff] %v361
          %417 = vst [vmem:[#allocation4 + $0x18] sm:$0xff] %v393
          %418 = vst [vmem:[#allocation4 + $0x20] sm:$0xff] %v364
          %419 = vst [vmem:[#allocation4 + $0x28] sm:$0xff] %v396
          %420 = vst [vmem:[#allocation4 + $0x30] sm:$0xff] %v367
          %421 = vst [vmem:[#allocation4 + $0x38] sm:$0xff] %v399
        $region44: #{tpu_custom_call.1} parent=35 // pred_fallthru
          _
        %s422 = smul.u32 %s32, 128
        %s423 = sshra.s32 %s422, 7
        %s424 = sand.u32 %s422, 127
        %s425 = smul.addr %s423, 4
        %s426 = scalar_lea.vmem [#allocation2], %s425
        %v427 = vld [vmem:[%s426] sm:$0xf]
        %v428 = vld [vmem:[#allocation3] sm:$0xff]
        %v429 = vld [vmem:[#allocation4] sm:$0xff]
        %v430 = vld [vmem:[#allocation4 + $0x8] sm:$0xff]
        %v431 = vld [vmem:[#allocation4 + $0x10] sm:$0xff]
        %v432 = vld [vmem:[#allocation4 + $0x18] sm:$0xff]
        %v433 = vld [vmem:[#allocation4 + $0x20] sm:$0xff]
        %v434 = vld [vmem:[#allocation4 + $0x28] sm:$0xff]
        %v435 = vld [vmem:[#allocation4 + $0x30] sm:$0xff]
        %v436 = vld [vmem:[#allocation4 + $0x38] sm:$0xff]
        %437 = vxpose.xlu0.b32.start [1/16] %v427, 128
        %438 = vxpose.xlu0.b32.cont [2/16] 0.0, 128
        %439 = vxpose.xlu0.b32.cont [3/16] 0.0, 128
        %440 = vxpose.xlu0.b32.cont [4/16] 0.0, 128
        %441 = vxpose.xlu0.b32.cont [5/16] 0.0, 128
        %442 = vxpose.xlu0.b32.cont [6/16] 0.0, 128
        %443 = vxpose.xlu0.b32.cont [7/16] 0.0, 128
        %444 = vxpose.xlu0.b32.cont [8/16] 0.0, 128
        %445 = vxpose.xlu0.b32.cont [9/16] 0.0, 128
        %446 = vxpose.xlu0.b32.cont [10/16] 0.0, 128
        %447 = vxpose.xlu0.b32.cont [11/16] 0.0, 128
        %448 = vxpose.xlu0.b32.cont [12/16] 0.0, 128
        %449 = vxpose.xlu0.b32.cont [13/16] 0.0, 128
        %450 = vxpose.xlu0.b32.cont [14/16] 0.0, 128
        %451 = vxpose.xlu0.b32.cont [15/16] 0.0, 128
        %452 = vxpose.xlu0.b32.end [16/16] 0.0, 128
        %v453 = vpop.trf.xlu0
        %v454 = vpop.trf.xlu0
        %v455 = vpop.trf.xlu0
        %v456 = vpop.trf.xlu0
        %v457 = vpop.trf.xlu0
        %v458 = vpop.trf.xlu0
        %v459 = vpop.trf.xlu0
        %v460 = vpop.trf.xlu0
        %v461 = vpop.trf.xlu0
        %v462 = vpop.trf.xlu0
        %v463 = vpop.trf.xlu0
        %v464 = vpop.trf.xlu0
        %v465 = vpop.trf.xlu0
        %v466 = vpop.trf.xlu0
        %v467 = vpop.trf.xlu0
        %v468 = vpop.trf.xlu0
        %470 = vst [vmem:[#allocation1] ss:$2 sm:$0xff] %v428
        %v471 = vld.sshfl [vmem:[#allocation1] sm:$0xff pattern:$0x75316420]
        %v472 = vld.sshfl [vmem:[#allocation1 + $0x8] sm:$0xff pattern:$0x75316420]
        %vm473 = vcmask 31744
        %v475 = vsel %vm473, %v453, 0
        %v478 = vsel %vm473, %v454, 0
        %v481 = vsel %vm473, %v455, 0
        %v484 = vsel %vm473, %v456, 0
        %v487 = vsel %vm473, %v457, 0
        %v490 = vsel %vm473, %v458, 0
        %v493 = vsel %vm473, %v459, 0
        %v496 = vsel %vm473, %v460, 0
        %v499 = vsel %vm473, %v461, 0
        %v502 = vsel %vm473, %v462, 0
        %v505 = vsel %vm473, %v463, 0
        %v508 = vsel %vm473, %v464, 0
        %v511 = vsel %vm473, %v465, 0
        %v514 = vsel %vm473, %v466, 0
        %v517 = vsel %vm473, %v467, 0
        %v520 = vsel %vm473, %v468, 0
        %vm522 = vcmask 1043456
        %v523 = vsel %vm522, %v471, 0
        %v525 = vsel %vm522, %v472, 0
        %527 = vmatpush.msra.mxu0 0.0
        %528 = vmatpush.msra.mxu0 0.0
        %529 = vmatpush.msra.mxu0 0.0
        %530 = vmatpush.msra.mxu0 0.0
        %531 = vmatpush.msra.mxu0 0.0
        %532 = vmatpush.msra.mxu0 0.0
        %533 = vmatpush.msra.mxu0 0.0
        %534 = vmatpush.msra.mxu0 0.0
        %535 = vmatpush.msra.mxu0 0.0
        %536 = vmatpush.msra.mxu0 0.0
        %537 = vmatpush.msra.mxu0 0.0
        %538 = vmatpush.msra.mxu0 0.0
        %539 = vmatpush.msra.mxu0 0.0
        %540 = vmatpush.msra.mxu0 0.0
        %541 = vmatpush.msra.mxu0 0.0
        %542 = vmatpush.msra.mxu0 %v523
        %543 = vmatmul.f32.gmra.mxu0 %v475
        %v544 = vpop.f32.mrf.mxu0
        %v545 = vadd.f32 0.0, %v544
        %546 = vmatmul.f32.gmra.mxu0 %v478
        %v547 = vpop.f32.mrf.mxu0
        %v548 = vadd.f32 0.0, %v547
        %549 = vmatmul.f32.gmra.mxu0 %v481
        %v550 = vpop.f32.mrf.mxu0
        %v551 = vadd.f32 0.0, %v550
        %552 = vmatmul.f32.gmra.mxu0 %v484
        %v553 = vpop.f32.mrf.mxu0
        %v554 = vadd.f32 0.0, %v553
        %555 = vmatmul.f32.gmra.mxu0 %v487
        %v556 = vpop.f32.mrf.mxu0
        %v557 = vadd.f32 0.0, %v556
        %558 = vmatmul.f32.gmra.mxu0 %v490
        %v559 = vpop.f32.mrf.mxu0
        %v560 = vadd.f32 0.0, %v559
        %561 = vmatmul.f32.gmra.mxu0 %v493
        %v562 = vpop.f32.mrf.mxu0
        %v563 = vadd.f32 0.0, %v562
        %564 = vmatmul.f32.gmra.mxu0 %v496
        %v565 = vpop.f32.mrf.mxu0
        %v566 = vadd.f32 0.0, %v565
        %567 = vmatmul.f32.gmra.mxu0 %v499
        %v568 = vpop.f32.mrf.mxu0
        %v569 = vadd.f32 0.0, %v568
        %570 = vmatmul.f32.gmra.mxu0 %v502
        %v571 = vpop.f32.mrf.mxu0
        %v572 = vadd.f32 0.0, %v571
        %573 = vmatmul.f32.gmra.mxu0 %v505
        %v574 = vpop.f32.mrf.mxu0
        %v575 = vadd.f32 0.0, %v574
        %576 = vmatmul.f32.gmra.mxu0 %v508
        %v577 = vpop.f32.mrf.mxu0
        %v578 = vadd.f32 0.0, %v577
        %579 = vmatmul.f32.gmra.mxu0 %v511
        %v580 = vpop.f32.mrf.mxu0
        %v581 = vadd.f32 0.0, %v580
        %582 = vmatmul.f32.gmra.mxu0 %v514
        %v583 = vpop.f32.mrf.mxu0
        %v584 = vadd.f32 0.0, %v583
        %585 = vmatmul.f32.gmra.mxu0 %v517
        %v586 = vpop.f32.mrf.mxu0
        %v587 = vadd.f32 0.0, %v586
        %588 = vmatmul.f32.gmra.mxu0 %v520
        %v589 = vpop.f32.mrf.mxu0
        %v590 = vadd.f32 0.0, %v589
        %591 = vdwg.mxu0
        %592 = vmatpush.msra.mxu0 0.0
        %593 = vmatpush.msra.mxu0 0.0
        %594 = vmatpush.msra.mxu0 0.0
        %595 = vmatpush.msra.mxu0 0.0
        %596 = vmatpush.msra.mxu0 0.0
        %597 = vmatpush.msra.mxu0 0.0
        %598 = vmatpush.msra.mxu0 0.0
        %599 = vmatpush.msra.mxu0 0.0
        %600 = vmatpush.msra.mxu0 0.0
        %601 = vmatpush.msra.mxu0 0.0
        %602 = vmatpush.msra.mxu0 0.0
        %603 = vmatpush.msra.mxu0 0.0
        %604 = vmatpush.msra.mxu0 0.0
        %605 = vmatpush.msra.mxu0 0.0
        %606 = vmatpush.msra.mxu0 0.0
        %607 = vmatpush.msra.mxu0 %v525
        %608 = vmatmul.f32.gmra.mxu0 %v475
        %v609 = vpop.f32.mrf.mxu0
        %v610 = vadd.f32 0.0, %v609
        %611 = vmatmul.f32.gmra.mxu0 %v478
        %v612 = vpop.f32.mrf.mxu0
        %v613 = vadd.f32 0.0, %v612
        %614 = vmatmul.f32.gmra.mxu0 %v481
        %v615 = vpop.f32.mrf.mxu0
        %v616 = vadd.f32 0.0, %v615
        %617 = vmatmul.f32.gmra.mxu0 %v484
        %v618 = vpop.f32.mrf.mxu0
        %v619 = vadd.f32 0.0, %v618
        %620 = vmatmul.f32.gmra.mxu0 %v487
        %v621 = vpop.f32.mrf.mxu0
        %v622 = vadd.f32 0.0, %v621
        %623 = vmatmul.f32.gmra.mxu0 %v490
        %v624 = vpop.f32.mrf.mxu0
        %v625 = vadd.f32 0.0, %v624
        %626 = vmatmul.f32.gmra.mxu0 %v493
        %v627 = vpop.f32.mrf.mxu0
        %v628 = vadd.f32 0.0, %v627
        %629 = vmatmul.f32.gmra.mxu0 %v496
        %v630 = vpop.f32.mrf.mxu0
        %v631 = vadd.f32 0.0, %v630
        %632 = vmatmul.f32.gmra.mxu0 %v499
        %v633 = vpop.f32.mrf.mxu0
        %v634 = vadd.f32 0.0, %v633
        %635 = vmatmul.f32.gmra.mxu0 %v502
        %v636 = vpop.f32.mrf.mxu0
        %v637 = vadd.f32 0.0, %v636
        %638 = vmatmul.f32.gmra.mxu0 %v505
        %v639 = vpop.f32.mrf.mxu0
        %v640 = vadd.f32 0.0, %v639
        %641 = vmatmul.f32.gmra.mxu0 %v508
        %v642 = vpop.f32.mrf.mxu0
        %v643 = vadd.f32 0.0, %v642
        %644 = vmatmul.f32.gmra.mxu0 %v511
        %v645 = vpop.f32.mrf.mxu0
        %v646 = vadd.f32 0.0, %v645
        %647 = vmatmul.f32.gmra.mxu0 %v514
        %v648 = vpop.f32.mrf.mxu0
        %v649 = vadd.f32 0.0, %v648
        %650 = vmatmul.f32.gmra.mxu0 %v517
        %v651 = vpop.f32.mrf.mxu0
        %v652 = vadd.f32 0.0, %v651
        %653 = vmatmul.f32.gmra.mxu0 %v520
        %v654 = vpop.f32.mrf.mxu0
        %v655 = vadd.f32 0.0, %v654
        %656 = vdwg.mxu0
        %v657 = vmax.f32 %v545, %v610
        %658 = vmax.xlane.f32.xlu0 %v657
        %v659 = vpop.xlane.xlu0 %658
        %v660 = vmax.f32 %v548, %v613
        %661 = vmax.xlane.f32.xlu0 %v660
        %v662 = vpop.xlane.xlu0 %661
        %v663 = vmax.f32 %v551, %v616
        %664 = vmax.xlane.f32.xlu0 %v663
        %v665 = vpop.xlane.xlu0 %664
        %v666 = vmax.f32 %v554, %v619
        %667 = vmax.xlane.f32.xlu0 %v666
        %v668 = vpop.xlane.xlu0 %667
        %v669 = vmax.f32 %v557, %v622
        %670 = vmax.xlane.f32.xlu0 %v669
        %v671 = vpop.xlane.xlu0 %670
        %v672 = vmax.f32 %v560, %v625
        %673 = vmax.xlane.f32.xlu0 %v672
        %v674 = vpop.xlane.xlu0 %673
        %v675 = vmax.f32 %v563, %v628
        %676 = vmax.xlane.f32.xlu0 %v675
        %v677 = vpop.xlane.xlu0 %676
        %v678 = vmax.f32 %v566, %v631
        %679 = vmax.xlane.f32.xlu0 %v678
        %v680 = vpop.xlane.xlu0 %679
        %v681 = vmax.f32 %v569, %v634
        %682 = vmax.xlane.f32.xlu0 %v681
        %v683 = vpop.xlane.xlu0 %682
        %v684 = vmax.f32 %v572, %v637
        %685 = vmax.xlane.f32.xlu0 %v684
        %v686 = vpop.xlane.xlu0 %685
        %v687 = vmax.f32 %v575, %v640
        %688 = vmax.xlane.f32.xlu0 %v687
        %v689 = vpop.xlane.xlu0 %688
        %v690 = vmax.f32 %v578, %v643
        %691 = vmax.xlane.f32.xlu0 %v690
        %v692 = vpop.xlane.xlu0 %691
        %v693 = vmax.f32 %v581, %v646
        %694 = vmax.xlane.f32.xlu0 %v693
        %v695 = vpop.xlane.xlu0 %694
        %v696 = vmax.f32 %v584, %v649
        %697 = vmax.xlane.f32.xlu0 %v696
        %v698 = vpop.xlane.xlu0 %697
        %v699 = vmax.f32 %v587, %v652
        %700 = vmax.xlane.f32.xlu0 %v699
        %v701 = vpop.xlane.xlu0 %700
        %v702 = vmax.f32 %v590, %v655
        %703 = vmax.xlane.f32.xlu0 %v702
        %v704 = vpop.xlane.xlu0 %703
        %v705 = vsub.f32 %v545, %v659
        %v706 = vsub.f32 %v610, %v659
        %v707 = vsub.f32 %v548, %v662
        %v708 = vsub.f32 %v613, %v662
        %v709 = vsub.f32 %v551, %v665
        %v710 = vsub.f32 %v616, %v665
        %v711 = vsub.f32 %v554, %v668
        %v712 = vsub.f32 %v619, %v668
        %v713 = vsub.f32 %v557, %v671
        %v714 = vsub.f32 %v622, %v671
        %v715 = vsub.f32 %v560, %v674
        %v716 = vsub.f32 %v625, %v674
        %v717 = vsub.f32 %v563, %v677
        %v718 = vsub.f32 %v628, %v677
        %v719 = vsub.f32 %v566, %v680
        %v720 = vsub.f32 %v631, %v680
        %v721 = vsub.f32 %v569, %v683
        %v722 = vsub.f32 %v634, %v683
        %v723 = vsub.f32 %v572, %v686
        %v724 = vsub.f32 %v637, %v686
        %v725 = vsub.f32 %v575, %v689
        %v726 = vsub.f32 %v640, %v689
        %v727 = vsub.f32 %v578, %v692
        %v728 = vsub.f32 %v643, %v692
        %v729 = vsub.f32 %v581, %v695
        %v730 = vsub.f32 %v646, %v695
        %v731 = vsub.f32 %v584, %v698
        %v732 = vsub.f32 %v649, %v698
        %v733 = vsub.f32 %v587, %v701
        %v734 = vsub.f32 %v652, %v701
        %v735 = vsub.f32 %v590, %v704
        %v736 = vsub.f32 %v655, %v704
        %v737 = vmul.f32 %v705, 1.442695
        %v738 = vpow.pop %v737
        %v739 = vmul.f32 %v706, 1.442695
        %v740 = vpow.pop %v739
        %v741 = vmul.f32 %v707, 1.442695
        %v742 = vpow.pop %v741
        %v743 = vmul.f32 %v708, 1.442695
        %v744 = vpow.pop %v743
        %v745 = vmul.f32 %v709, 1.442695
        %v746 = vpow.pop %v745
        %v747 = vmul.f32 %v710, 1.442695
        %v748 = vpow.pop %v747
        %v749 = vmul.f32 %v711, 1.442695
        %v750 = vpow.pop %v749
        %v751 = vmul.f32 %v712, 1.442695
        %v752 = vpow.pop %v751
        %v753 = vmul.f32 %v713, 1.442695
        %v754 = vpow.pop %v753
        %v755 = vmul.f32 %v714, 1.442695
        %v756 = vpow.pop %v755
        %v757 = vmul.f32 %v715, 1.442695
        %v758 = vpow.pop %v757
        %v759 = vmul.f32 %v716, 1.442695
        %v760 = vpow.pop %v759
        %v761 = vmul.f32 %v717, 1.442695
        %v762 = vpow.pop %v761
        %v763 = vmul.f32 %v718, 1.442695
        %v764 = vpow.pop %v763
        %v765 = vmul.f32 %v719, 1.442695
        %v766 = vpow.pop %v765
        %v767 = vmul.f32 %v720, 1.442695
        %v768 = vpow.pop %v767
        %v769 = vmul.f32 %v721, 1.442695
        %v770 = vpow.pop %v769
        %v771 = vmul.f32 %v722, 1.442695
        %v772 = vpow.pop %v771
        %v773 = vmul.f32 %v723, 1.442695
        %v774 = vpow.pop %v773
        %v775 = vmul.f32 %v724, 1.442695
        %v776 = vpow.pop %v775
        %v777 = vmul.f32 %v725, 1.442695
        %v778 = vpow.pop %v777
        %v779 = vmul.f32 %v726, 1.442695
        %v780 = vpow.pop %v779
        %v781 = vmul.f32 %v727, 1.442695
        %v782 = vpow.pop %v781
        %v783 = vmul.f32 %v728, 1.442695
        %v784 = vpow.pop %v783
        %v785 = vmul.f32 %v729, 1.442695
        %v786 = vpow.pop %v785
        %v787 = vmul.f32 %v730, 1.442695
        %v788 = vpow.pop %v787
        %v789 = vmul.f32 %v731, 1.442695
        %v790 = vpow.pop %v789
        %v791 = vmul.f32 %v732, 1.442695
        %v792 = vpow.pop %v791
        %v793 = vmul.f32 %v733, 1.442695
        %v794 = vpow.pop %v793
        %v795 = vmul.f32 %v734, 1.442695
        %v796 = vpow.pop %v795
        %v797 = vmul.f32 %v735, 1.442695
        %v798 = vpow.pop %v797
        %v799 = vmul.f32 %v736, 1.442695
        %v800 = vpow.pop %v799
        %v801 = vadd.f32 %v738, %v740
        %802 = vadd.xlane.f32.xlu0 %v801
        %v803 = vpop.xlane.xlu0 %802
        %v804 = vadd.f32 %v742, %v744
        %805 = vadd.xlane.f32.xlu0 %v804
        %v806 = vpop.xlane.xlu0 %805
        %v807 = vadd.f32 %v746, %v748
        %808 = vadd.xlane.f32.xlu0 %v807
        %v809 = vpop.xlane.xlu0 %808
        %v810 = vadd.f32 %v750, %v752
        %811 = vadd.xlane.f32.xlu0 %v810
        %v812 = vpop.xlane.xlu0 %811
        %v813 = vadd.f32 %v754, %v756
        %814 = vadd.xlane.f32.xlu0 %v813
        %v815 = vpop.xlane.xlu0 %814
        %v816 = vadd.f32 %v758, %v760
        %817 = vadd.xlane.f32.xlu0 %v816
        %v818 = vpop.xlane.xlu0 %817
        %v819 = vadd.f32 %v762, %v764
        %820 = vadd.xlane.f32.xlu0 %v819
        %v821 = vpop.xlane.xlu0 %820
        %v822 = vadd.f32 %v766, %v768
        %823 = vadd.xlane.f32.xlu0 %v822
        %v824 = vpop.xlane.xlu0 %823
        %v825 = vadd.f32 %v770, %v772
        %826 = vadd.xlane.f32.xlu0 %v825
        %v827 = vpop.xlane.xlu0 %826
        %v828 = vadd.f32 %v774, %v776
        %829 = vadd.xlane.f32.xlu0 %v828
        %v830 = vpop.xlane.xlu0 %829
        %v831 = vadd.f32 %v778, %v780
        %832 = vadd.xlane.f32.xlu0 %v831
        %v833 = vpop.xlane.xlu0 %832
        %v834 = vadd.f32 %v782, %v784
        %835 = vadd.xlane.f32.xlu0 %v834
        %v836 = vpop.xlane.xlu0 %835
        %v837 = vadd.f32 %v786, %v788
        %838 = vadd.xlane.f32.xlu0 %v837
        %v839 = vpop.xlane.xlu0 %838
        %v840 = vadd.f32 %v790, %v792
        %841 = vadd.xlane.f32.xlu0 %v840
        %v842 = vpop.xlane.xlu0 %841
        %v843 = vadd.f32 %v794, %v796
        %844 = vadd.xlane.f32.xlu0 %v843
        %v845 = vpop.xlane.xlu0 %844
        %v846 = vadd.f32 %v798, %v800
        %847 = vadd.xlane.f32.xlu0 %v846
        %v848 = vpop.xlane.xlu0 %847
        %v849 = vrcp.pop %v803
        %v850 = vrcp.pop %v806
        %v851 = vrcp.pop %v809
        %v852 = vrcp.pop %v812
        %v853 = vrcp.pop %v815
        %v854 = vrcp.pop %v818
        %v855 = vrcp.pop %v821
        %v856 = vrcp.pop %v824
        %v857 = vrcp.pop %v827
        %v858 = vrcp.pop %v830
        %v859 = vrcp.pop %v833
        %v860 = vrcp.pop %v836
        %v861 = vrcp.pop %v839
        %v862 = vrcp.pop %v842
        %v863 = vrcp.pop %v845
        %v864 = vrcp.pop %v848
        %v865 = vmul.f32 %v738, %v849
        %v866 = vmul.f32 %v740, %v849
        %v867 = vmul.f32 %v742, %v850
        %v868 = vmul.f32 %v744, %v850
        %v869 = vmul.f32 %v746, %v851
        %v870 = vmul.f32 %v748, %v851
        %v871 = vmul.f32 %v750, %v852
        %v872 = vmul.f32 %v752, %v852
        %v873 = vmul.f32 %v754, %v853
        %v874 = vmul.f32 %v756, %v853
        %v875 = vmul.f32 %v758, %v854
        %v876 = vmul.f32 %v760, %v854
        %v877 = vmul.f32 %v762, %v855
        %v878 = vmul.f32 %v764, %v855
        %v879 = vmul.f32 %v766, %v856
        %v880 = vmul.f32 %v768, %v856
        %v881 = vmul.f32 %v770, %v857
        %v882 = vmul.f32 %v772, %v857
        %v883 = vmul.f32 %v774, %v858
        %v884 = vmul.f32 %v776, %v858
        %v885 = vmul.f32 %v778, %v859
        %v886 = vmul.f32 %v780, %v859
        %v887 = vmul.f32 %v782, %v860
        %v888 = vmul.f32 %v784, %v860
        %v889 = vmul.f32 %v786, %v861
        %v890 = vmul.f32 %v788, %v861
        %v891 = vmul.f32 %v790, %v862
        %v892 = vmul.f32 %v792, %v862
        %v893 = vmul.f32 %v794, %v863
        %v894 = vmul.f32 %v796, %v863
        %v895 = vmul.f32 %v798, %v864
        %v896 = vmul.f32 %v800, %v864
        %897 = vst [vmem:[%s272] sm:$0xff] %v865
        %898 = vst [vmem:[%s272 + $0x8] sm:$0xff] %v866
        %899 = vst [vmem:[%s272 + $0x10] sm:$0xff] %v867
        %900 = vst [vmem:[%s272 + $0x18] sm:$0xff] %v868
        %901 = vst [vmem:[%s272 + $0x20] sm:$0xff] %v869
        %902 = vst [vmem:[%s272 + $0x28] sm:$0xff] %v870
        %903 = vst [vmem:[%s272 + $0x30] sm:$0xff] %v871
        %904 = vst [vmem:[%s272 + $0x38] sm:$0xff] %v872
        %905 = vst [vmem:[%s272 + $0x40] sm:$0xff] %v873
        %906 = vst [vmem:[%s272 + $0x48] sm:$0xff] %v874
        %907 = vst [vmem:[%s272 + $0x50] sm:$0xff] %v875
        %908 = vst [vmem:[%s272 + $0x58] sm:$0xff] %v876
        %909 = vst [vmem:[%s272 + $0x60] sm:$0xff] %v877
        %910 = vst [vmem:[%s272 + $0x68] sm:$0xff] %v878
        %911 = vst [vmem:[%s272 + $0x70] sm:$0xff] %v879
        %912 = vst [vmem:[%s272 + $0x78] sm:$0xff] %v880
        %913 = vst [vmem:[%s272 + $0x80] sm:$0xff] %v881
        %914 = vst [vmem:[%s272 + $0x88] sm:$0xff] %v882
        %915 = vst [vmem:[%s272 + $0x90] sm:$0xff] %v883
        %916 = vst [vmem:[%s272 + $0x98] sm:$0xff] %v884
        %917 = vst [vmem:[%s272 + $0xa0] sm:$0xff] %v885
        %918 = vst [vmem:[%s272 + $0xa8] sm:$0xff] %v886
        %919 = vst [vmem:[%s272 + $0xb0] sm:$0xff] %v887
        %920 = vst [vmem:[%s272 + $0xb8] sm:$0xff] %v888
        %921 = vst [vmem:[%s272 + $0xc0] sm:$0xff] %v889
        %922 = vst [vmem:[%s272 + $0xc8] sm:$0xff] %v890
        %923 = vst [vmem:[%s272 + $0xd0] sm:$0xff] %v891
        %924 = vst [vmem:[%s272 + $0xd8] sm:$0xff] %v892
        %925 = vst [vmem:[%s272 + $0xe0] sm:$0xff] %v893
        %926 = vst [vmem:[%s272 + $0xe8] sm:$0xff] %v894
        %927 = vst [vmem:[%s272 + $0xf0] sm:$0xff] %v895
        %928 = vst [vmem:[%s272 + $0xf8] sm:$0xff] %v896
        %929 = vmatpush.xpose.msra.mxu0 %v895
        %930 = vmatpush.xpose.msra.mxu0 %v893
        %931 = vmatpush.xpose.msra.mxu0 %v891
        %932 = vmatpush.xpose.msra.mxu0 %v889
        %933 = vmatpush.xpose.msra.mxu0 %v887
        %934 = vmatpush.xpose.msra.mxu0 %v885
        %935 = vmatpush.xpose.msra.mxu0 %v883
        %936 = vmatpush.xpose.msra.mxu0 %v881
        %937 = vmatpush.xpose.msra.mxu0 %v879
        %938 = vmatpush.xpose.msra.mxu0 %v877
        %939 = vmatpush.xpose.msra.mxu0 %v875
        %940 = vmatpush.xpose.msra.mxu0 %v873
        %941 = vmatpush.xpose.msra.mxu0 %v871
        %942 = vmatpush.xpose.msra.mxu0 %v869
        %943 = vmatpush.xpose.msra.mxu0 %v867
        %944 = vmatpush.xpose.msra.mxu0 %v865
        %945 = vmatmul.f32.gmra.mxu0 %v429
        %v946 = vpop.f32.mrf.mxu0
        %v947 = vadd.f32 0.0, %v946
        %948 = vmatmul.f32.gmra.mxu0 %v431
        %v949 = vpop.f32.mrf.mxu0
        %v950 = vadd.f32 0.0, %v949
        %951 = vmatmul.f32.gmra.mxu0 %v433
        %v952 = vpop.f32.mrf.mxu0
        %v953 = vadd.f32 0.0, %v952
        %954 = vmatmul.f32.gmra.mxu0 %v435
        %v955 = vpop.f32.mrf.mxu0
        %v956 = vadd.f32 0.0, %v955
        %957 = vdwg.mxu0
        %958 = vmatpush.xpose.msra.mxu0 %v896
        %959 = vmatpush.xpose.msra.mxu0 %v894
        %960 = vmatpush.xpose.msra.mxu0 %v892
        %961 = vmatpush.xpose.msra.mxu0 %v890
        %962 = vmatpush.xpose.msra.mxu0 %v888
        %963 = vmatpush.xpose.msra.mxu0 %v886
        %964 = vmatpush.xpose.msra.mxu0 %v884
        %965 = vmatpush.xpose.msra.mxu0 %v882
        %966 = vmatpush.xpose.msra.mxu0 %v880
        %967 = vmatpush.xpose.msra.mxu0 %v878
        %968 = vmatpush.xpose.msra.mxu0 %v876
        %969 = vmatpush.xpose.msra.mxu0 %v874
        %970 = vmatpush.xpose.msra.mxu0 %v872
        %971 = vmatpush.xpose.msra.mxu0 %v870
        %972 = vmatpush.xpose.msra.mxu0 %v868
        %973 = vmatpush.xpose.msra.mxu0 %v866
        %974 = vmatmul.f32.gmra.mxu0 %v430
        %v975 = vpop.f32.mrf.mxu0
        %v976 = vadd.f32 %v947, %v975
        %977 = vmatmul.f32.gmra.mxu0 %v432
        %v978 = vpop.f32.mrf.mxu0
        %v979 = vadd.f32 %v950, %v978
        %980 = vmatmul.f32.gmra.mxu0 %v434
        %v981 = vpop.f32.mrf.mxu0
        %v982 = vadd.f32 %v953, %v981
        %983 = vmatmul.f32.gmra.mxu0 %v436
        %v984 = vpop.f32.mrf.mxu0
        %v985 = vadd.f32 %v956, %v984
        %986 = vdwg.mxu0
        %s987 = smul.addr %s423, 8
        %s988 = scalar_lea.vmem %s240, %s987 [#allocation6]
        %v989 = vld [vmem:[%s988] sm:$0xff]
        %v990 = vld [vmem:[%s988 + $0x10] sm:$0xff]
        %v991 = vld [vmem:[%s988 + $0x20] sm:$0xff]
        %v992 = vld [vmem:[%s988 + $0x30] sm:$0xff]
        %s993 = sld [smem:[#allocation5]]
        %v994 = vstv %s993
        %v995 = vmul.f32 %v994, %v976
        %v996 = vmul.f32 %v994, %v979
        %v997 = vmul.f32 %v994, %v982
        %v998 = vmul.f32 %v994, %v985
        %v999 = vadd.f32 %v995, %v989
        %v1000 = vadd.f32 %v996, %v990
        %v1001 = vadd.f32 %v997, %v991
        %v1002 = vadd.f32 %v998, %v992
        %1003 = vst [vmem:[%s265] sm:$0xff] %v999
        %1004 = vst [vmem:[%s265 + $0x8] sm:$0xff] %v1000
        %1005 = vst [vmem:[%s265 + $0x10] sm:$0xff] %v1001
        %1006 = vst [vmem:[%s265 + $0x18] sm:$0xff] %v1002
        %s1007 = sand.u32 %s138, 1
        %s1008 = scalar_lea.sflag [#allocation8], %s1007
        %s1009 = sand.u32 %s138, 1
        %s1010 = smul.addr %s1009, 32
        %s1011 = scalar_lea.vmem [#allocation9], %s1010
        %s1012 = sand.u32 %s166, 1
        %s1013 = scalar_lea.sflag [#allocation11], %s1012
        %s1014 = sand.u32 %s166, 1
        %s1015 = smul.addr %s1014, 256
        %s1016 = scalar_lea.vmem [#allocation10], %s1015
        // Predicated region
        $region45: #{tpu_custom_call.1} parent=35 // pred_check
          %p1017 = pneg %p148
        $region46: #{tpu_custom_call.1} parent=35 // pred_check_branch
          %1019 = sbr.rel (%p1017) target = $region48
        $region47: #{tpu_custom_call.1} parent=35 // pred_region
          %1021 = vsyncadd %s1008, 0
          %s1022 = smul.addr %s31, 8
          %s1023 = sadd.s32 %s32, %s1022
          %s1024 = smul.addr %s1023, 8
          %s1025 = scalar_lea.hbm %s4, %s1024
          %s1026 = sshll.u32 %s1011, 4
          %s1027 = int_to_ptr.vmem [resolvable:$true] %s1026
          %s1028 = sshll.u32 %s1025, 4
          %s1029 = int_to_ptr.hbm [resolvable:$true] %s1028
          %1034 = dma.vmem_to_hbm [thread:$0]  %s1027, 512, %s1029, %s1008, 128, 256, 8
        $region48: #{tpu_custom_call.1} parent=35 // pred_fallthru
          _
        // Predicated region
        $region49: #{tpu_custom_call.1} parent=35 // pred_check
          %p1035 = pneg %p176
        $region50: #{tpu_custom_call.1} parent=35 // pred_check_branch
          %1037 = sbr.rel (%p1035) target = $region52
        $region51: #{tpu_custom_call.1} parent=35 // pred_region
          %s1038 = smul.u32 16, %s32
          %1040 = vsyncadd %s1013, 0
          %s1041 = smul.addr %s1038, 2
          %s1042 = smul.addr %s31, 64
          %s1043 = sadd.s32 %s1041, %s1042
          %s1044 = smul.addr %s1043, 8
          %s1045 = scalar_lea.hbm %s5, %s1044
          %s1046 = sshll.u32 %s1016, 4
          %s1047 = int_to_ptr.vmem [resolvable:$true] %s1046
          %s1048 = sshll.u32 %s1045, 4
          %s1049 = int_to_ptr.hbm [resolvable:$true] %s1048
          %1054 = dma.vmem_to_hbm [thread:$0]  %s1047, 4096, %s1049, %s1013, 256, 256, 16
        $region52: #{tpu_custom_call.1} parent=35 // pred_fallthru
          _
      $region36: #{tpu_custom_call.1} parent=5 // pred_fallthru
        _
      %p1055 = scmp.le.s32.totalorder 2, %s22
      // Predicated region
      $region53: #{tpu_custom_call.1} parent=5 // pred_check
        %p1056 = pneg %p1055
      $region54: #{tpu_custom_call.1} parent=5 // pred_check_branch
        %1058 = sbr.rel (%p1056) target = $region56
      $region55: #{tpu_custom_call.1} parent=5 // pred_region
        %s1059 = ssub.s32 %s22, 2
        // Predicated region
        $region57: #{tpu_custom_call.1} parent=55 // pred_check
          %p1060 = pneg %p154
        $region58: #{tpu_custom_call.1} parent=55 // pred_check_branch
          %1062 = sbr.rel (%p1060) target = $region60
        $region59: #{tpu_custom_call.1} parent=55 // pred_region
          %s1063 = sand.u32 %s139, 1
          %s1064 = scalar_lea.sflag [#allocation8], %s1063
          %s1065 = sand.u32 %s139, 1
          %s1066 = smul.addr %s1065, 32
          %s1067 = scalar_lea.vmem [#allocation9], %s1066
          %1069 = dma.done %s1064, 512
        $region60: #{tpu_custom_call.1} parent=55 // pred_fallthru
          _
        // Predicated region
        $region61: #{tpu_custom_call.1} parent=55 // pred_check
          %p1070 = pneg %p182
        $region62: #{tpu_custom_call.1} parent=55 // pred_check_branch
          %1072 = sbr.rel (%p1070) target = $region64
        $region63: #{tpu_custom_call.1} parent=55 // pred_region
          %s1073 = sand.u32 %s167, 1
          %s1074 = scalar_lea.sflag [#allocation11], %s1073
          %s1075 = sand.u32 %s167, 1
          %s1076 = smul.addr %s1075, 256
          %s1077 = scalar_lea.vmem [#allocation10], %s1076
          %1079 = dma.done %s1074, 4096
        $region64: #{tpu_custom_call.1} parent=55 // pred_fallthru
          _
      $region56: #{tpu_custom_call.1} parent=5 // pred_fallthru
        _
    $region6: #{tpu_custom_call.1} parent=1 // loop_footer
      %s26 = sadd.s32 1, %s22
    $region7: #{tpu_custom_call.1} parent=1 // loop_footer_branch
      %21 = sbr.rel target = $region3
    $region8: #{tpu_custom_call.1} parent=1 // loop_exit
      _
    %1080 = vsyncpa [#allocation7], 1
    %s1081 = scalar_lea.sflag [#allocation7], 1
    %1082 = vsyncpa %s1081, 1
    %1083 = vsyncpa [#allocation8], 1
    %s1084 = scalar_lea.sflag [#allocation8], 1
    %1085 = vsyncpa %s1084, 1
    %1086 = vsyncpa [#allocation11], 1
    %s1087 = scalar_lea.sflag [#allocation11], 1
    %1088 = vsyncpa %s1087, 1

</llo_original>
